<compile_context>
chip_gen: v7x
topology: tpu7x:2x2x1
jax: 0.10.0
libtpu: 0.0.40
codegen_flags: <defaults>
</compile_context>

<pallas_src>
import functools

import jax
import jax.numpy as jnp
from jax.experimental import pallas as pl
from jax.experimental.pallas import tpu as pltpu


def _split_attention_kernel(x_ref, w1_ref, b1_ref, w2_ref, b2_ref, o_ref, *,
                            channels, radix, cardinality, true_s):
    """One batch tile per grid step.

    x_ref  : [TB, radix, C//radix, S_pad]
    w1_ref : [C//radix, inter]   block-diagonal dense form of grouped 1x1 conv fc1
    b1_ref : [1, inter]
    w2_ref : [inter, C*radix]    block-diagonal dense fc2, columns pre-permuted to
                                 rSoftMax (radix, cardinality, C//cardinality) order
    b2_ref : [1, C*radix]        pre-permuted the same way
    o_ref  : [TB, radix, C//radix, S_pad]
    """
    del cardinality  # group structure is already folded into the dense weights
    cr = channels // radix
    tb = x_ref.shape[0]

    # ---- GAP: sum over radix splits and spatial, scale by 1/true_S.
    # (spatial padding is zeros, so sum * 1/true_S equals the true mean)
    gap = jnp.zeros((tb, cr), jnp.float32)
    for r in range(radix):
        x_r = x_ref[:, r:r + 1, :, :]                              # [TB, 1, cr, S_pad]
        gap = gap + jnp.sum(x_r.astype(jnp.float32), axis=(1, 3))
    gap = gap * (1.0 / float(true_s))                              # [TB, cr]

    # ---- fc1 (grouped 1x1 conv as block-diagonal matmul) + ReLU
    h = jnp.dot(gap, w1_ref[...], preferred_element_type=jnp.float32) + b1_ref[...]
    h = jnp.maximum(h, 0.0)                                        # [TB, inter]

    # ---- fc2
    logits = (jnp.dot(h, w2_ref[...], preferred_element_type=jnp.float32)
              + b2_ref[...])                                       # [TB, C*radix]

    # ---- rSoftMax over the radix axis.  With the pre-permuted fc2 columns the
    # softmax is over `radix` contiguous chunks of width C; the module's forward
    # only consumes the first C entries of the flattened attention (chunk r==0).
    if radix > 1:
        chunks = [logits[:, r * channels:(r + 1) * channels] for r in range(radix)]
        m = chunks[0]
        for c in chunks[1:]:
            m = jnp.maximum(m, c)
        e0 = jnp.exp(chunks[0] - m)
        denom = e0
        for c in chunks[1:]:
            denom = denom + jnp.exp(c - m)
        atten = e0 / denom                                         # [TB, C]
    else:
        atten = jax.nn.sigmoid(logits)                             # [TB, C]

    # ---- scale each radix split by its attention chunk (re-read x from VMEM so
    # the big block value is not live across the FC chain above).
    for r in range(radix):
        a_r = atten[:, r * cr:(r + 1) * cr].astype(o_ref.dtype)    # [TB, cr]
        o_ref[:, r:r + 1, :, :] = (a_r[:, None, :, None]
                                   * x_ref[:, r:r + 1, :, :])


def split_attention(x, w1_dense, b1, w2_dense_perm, b2_perm, *,
                    channels, radix, cardinality):
    """x: [B, C, H, W] (NCHW).  Returns [B, C, H, W] with the same dtype."""
    B, C, H, W = x.shape
    assert C == channels and C % radix == 0
    cr = C // radix
    S = H * W
    S_pad = ((S + 127) // 128) * 128          # lane-dense, unmasked stores
    inter = w1_dense.shape[1]
    itemsize = int(jnp.dtype(x.dtype).itemsize)

    # [B, C, H, W] -> [B, radix, cr, S_pad]: radix sum becomes an aligned axis sum
    x4 = x.reshape(B, radix, cr, S)
    if S_pad != S:
        x4 = jnp.pad(x4, ((0, 0), (0, 0), (0, 0), (0, S_pad - S)))

    # ---- batch tile TB sized against a VMEM budget that also fits v7x (64 MiB):
    # 2 in-buffers + 2 out-buffers of the x block, plus double-buffered weights.
    w_bytes = int(sum(int(a.size) * int(jnp.dtype(a.dtype).itemsize)
                      for a in (w1_dense, b1, w2_dense_perm, b2_perm)))
    x_bytes_per_batch = C * S_pad * itemsize
    budget = (40 << 20) - 2 * w_bytes
    tb = int(max(1, min(B, budget // (4 * x_bytes_per_batch))))
    if B > 1 and tb >= B:
        tb = int(pl.cdiv(B, 2))               # keep >= 2 grid steps (v7x megacore)
    grid = int(pl.cdiv(B, tb))

    vmem_need = 4 * tb * x_bytes_per_batch + 2 * w_bytes
    vmem_limit = int(min(max(vmem_need + (4 << 20), 16 << 20), 48 << 20))

    kernel = functools.partial(_split_attention_kernel,
                               channels=channels, radix=radix,
                               cardinality=cardinality, true_s=S)

    cost = pl.CostEstimate(
        flops=int(2 * B * (cr * inter + inter * C * radix) + 2 * B * C * S),
        transcendentals=int(B * C * radix),
        bytes_accessed=int(2 * B * C * S_pad * itemsize + w_bytes))

    out = pl.pallas_call(
        kernel,
        out_shape=jax.ShapeDtypeStruct((B, radix, cr, S_pad), x.dtype),
        grid=(grid,),
        in_specs=[
            pl.BlockSpec((tb, radix, cr, S_pad), lambda b: (b, 0, 0, 0)),
            pl.BlockSpec((cr, inter), lambda b: (0, 0)),
            pl.BlockSpec((1, inter), lambda b: (0, 0)),
            pl.BlockSpec((inter, C * radix), lambda b: (0, 0)),
            pl.BlockSpec((1, C * radix), lambda b: (0, 0)),
        ],
        out_specs=pl.BlockSpec((tb, radix, cr, S_pad), lambda b: (b, 0, 0, 0)),
        compiler_params=pltpu.CompilerParams(
            dimension_semantics=("parallel",),
            vmem_limit_bytes=vmem_limit),
        cost_estimate=cost,
    )(x4, w1_dense, b1.reshape(1, -1), w2_dense_perm, b2_perm.reshape(1, -1))

    if S_pad != S:
        out = out[:, :, :, :S]
    return out.reshape(B, C, H, W)


# ---------------- parameter construction (plain-JAX glue) ----------------

def make_params(channels, radix, cardinality, reduction_factor=4, key=None):
    inter = max(channels * radix // reduction_factor, 32)
    cr = channels // radix
    assert cr % cardinality == 0 and inter % cardinality == 0
    assert (channels * radix) % cardinality == 0

    k1, k2, k3, k4 = jax.random.split(key, 4)
    # grouped conv weights (1x1 kernels squeezed): [out_ch, in_ch_per_group]
    w1 = 0.10 * jax.random.normal(k1, (inter, cr // cardinality), jnp.float32)
    b1 = 0.05 * jax.random.normal(k2, (inter,), jnp.float32)
    w2 = 0.10 * jax.random.normal(k3, (channels * radix, inter // cardinality), jnp.float32)
    b2 = 0.05 * jax.random.normal(k4, (channels * radix,), jnp.float32)

    # block-diagonal dense equivalents (for y = x @ W + b)
    ic1, oc1 = cr // cardinality, inter // cardinality
    w1_dense = jnp.zeros((cr, inter), jnp.float32)
    for g in range(cardinality):
        w1_dense = w1_dense.at[g * ic1:(g + 1) * ic1, g * oc1:(g + 1) * oc1].set(
            w1[g * oc1:(g + 1) * oc1, :].T)

    ic2, oc2 = inter // cardinality, (channels * radix) // cardinality
    w2_dense = jnp.zeros((inter, channels * radix), jnp.float32)
    for g in range(cardinality):
        w2_dense = w2_dense.at[g * ic2:(g + 1) * ic2, g * oc2:(g + 1) * oc2].set(
            w2[g * oc2:(g + 1) * oc2, :].T)

    # permute fc2 output columns/bias from (card, radix, C//card) order to the
    # rSoftMax-transposed (radix, card, C//card) order
    ck = channels // cardinality
    w2_dense_perm = (w2_dense.reshape(inter, cardinality, radix, ck)
                     .transpose(0, 2, 1, 3).reshape(inter, radix * channels))
    b2_perm = (b2.reshape(cardinality, radix, ck)
               .transpose(1, 0, 2).reshape(-1))

    return w1_dense, b1, w2_dense, b2, w2_dense_perm, b2_perm


# ---------------- pure-JAX reference (mirrors PyTorch semantics) ----------------

def reference(x, w1_dense, b1, w2_dense, b2, *, channels, radix, cardinality):
    B, C, H, W = x.shape
    cr = C // radix
    gap = sum(x[:, r * cr:(r + 1) * cr] for r in range(radix))     # sum of splits
    gap = gap.mean(axis=(2, 3))                                    # [B, C//radix]
    h = jax.nn.relu(gap @ w1_dense + b1)                           # [B, inter]
    logits = h @ w2_dense + b2                                     # [B, C*radix]
    if radix > 1:
        t = logits.reshape(B, cardinality, radix, -1).transpose(0, 2, 1, 3)
        a = jax.nn.softmax(t, axis=1).reshape(B, -1)
    else:
        a = jax.nn.sigmoid(logits)
    atten = a[:, :C]        # zip() in the PyTorch forward only uses the first C
    return atten[:, :, None, None] * x


if __name__ == "__main__":
    B, channels, H, W = 2, 8, 16, 16
    radix, cardinality = 2, 2

    key = jax.random.PRNGKey(0)
    kx, kp = jax.random.split(key)
    x = jax.random.normal(kx, (B, channels, H, W), jnp.float32)

    w1_dense, b1, w2_dense, b2, w2_dense_perm, b2_perm = make_params(
        channels, radix, cardinality, key=kp)

    out = split_attention(x, w1_dense, b1, w2_dense_perm, b2_perm,
                          channels=channels, radix=radix, cardinality=cardinality)
    out = jax.block_until_ready(out)

    ref = reference(x, w1_dense, b1, w2_dense, b2,
                    channels=channels, radix=radix, cardinality=cardinality)
    assert out.shape == (B, channels, H, W)
    assert jnp.allclose(out, ref, rtol=1e-4, atol=1e-5), "mismatch vs reference"

    print("KERNEL_OK")
</pallas_src>

<mosaic_0001>
module attributes {stable_mosaic.version = 11 : i64} {
  func.func @_split_attention_kernel(%arg0: i32, %arg1: memref<1x2x4x256xf32, #tpu.memory_space<vmem>>, %arg2: memref<4x32xf32, #tpu.memory_space<vmem>>, %arg3: memref<1x32xf32, #tpu.memory_space<vmem>>, %arg4: memref<32x16xf32, #tpu.memory_space<vmem>>, %arg5: memref<1x16xf32, #tpu.memory_space<vmem>>, %arg6: memref<1x2x4x256xf32, #tpu.memory_space<vmem>>) attributes {dimension_semantics = [#tpu.dimension_semantics<parallel>], iteration_bounds = array<i64: 2>, scalar_prefetch = 0 : i64, scratch_operands = 0 : i64, tpu.core_type = #tpu.core_type<tc>, window_params = [{transform_indices = @transform_0, window_bounds = array<i64: 1, 2, 4, 256>}, {pipeline_mode = #tpu.pipeline_mode<synchronous>, transform_indices = @transform_1, window_bounds = array<i64: 4, 32>}, {pipeline_mode = #tpu.pipeline_mode<synchronous>, transform_indices = @transform_2, window_bounds = array<i64: 1, 32>}, {pipeline_mode = #tpu.pipeline_mode<synchronous>, transform_indices = @transform_3, window_bounds = array<i64: 32, 16>}, {pipeline_mode = #tpu.pipeline_mode<synchronous>, transform_indices = @transform_4, window_bounds = array<i64: 1, 16>}, {transform_indices = @transform_5, window_bounds = array<i64: 1, 2, 4, 256>}]} {
    %cst = arith.constant 0.000000e+00 : f32
    %0 = vector.broadcast %cst : f32 to vector<1x4xf32>
    %c0 = arith.constant 0 : index
    %c0_0 = arith.constant 0 : index
    %c0_1 = arith.constant 0 : index
    %c0_2 = arith.constant 0 : index
    %1 = vector.load %arg1[%c0, %c0_0, %c0_1, %c0_2] : memref<1x2x4x256xf32, #tpu.memory_space<vmem>>, vector<1x1x4x256xf32>
    %cst_3 = arith.constant dense<0.000000e+00> : vector<1x4xf32>
    %2 = vector.multi_reduction <add>, %1, %cst_3 [1, 3] : vector<1x1x4x256xf32> to vector<1x4xf32>
    %3 = arith.addf %0, %2 : vector<1x4xf32>
    %c0_4 = arith.constant 0 : index
    %c1 = arith.constant 1 : index
    %c0_5 = arith.constant 0 : index
    %c0_6 = arith.constant 0 : index
    %4 = vector.load %arg1[%c0_4, %c1, %c0_5, %c0_6] : memref<1x2x4x256xf32, #tpu.memory_space<vmem>>, vector<1x1x4x256xf32>
    %cst_7 = arith.constant dense<0.000000e+00> : vector<1x4xf32>
    %5 = vector.multi_reduction <add>, %4, %cst_7 [1, 3] : vector<1x1x4x256xf32> to vector<1x4xf32>
    %6 = arith.addf %3, %5 : vector<1x4xf32>
    %cst_8 = arith.constant 3.906250e-03 : f32
    %7 = vector.broadcast %cst_8 : f32 to vector<1x4xf32>
    %8 = arith.mulf %6, %7 : vector<1x4xf32>
    %c0_9 = arith.constant 0 : index
    %c0_10 = arith.constant 0 : index
    %9 = vector.load %arg2[%c0_9, %c0_10] : memref<4x32xf32, #tpu.memory_space<vmem>>, vector<4x32xf32>
    %cst_11 = arith.constant dense<0.000000e+00> : vector<1x32xf32>
    %10 = tpu.matmul %8, %9, %cst_11 {dimension_numbers = #tpu.dot_dimension_numbers<[1], [0], [0], [1], [0, 0, 1, 1], [], []>} : vector<1x4xf32>, vector<4x32xf32>, vector<1x32xf32> -> vector<1x32xf32>
    %c0_12 = arith.constant 0 : index
    %c0_13 = arith.constant 0 : index
    %11 = vector.load %arg3[%c0_12, %c0_13] : memref<1x32xf32, #tpu.memory_space<vmem>>, vector<1x32xf32>
    %12 = arith.addf %10, %11 : vector<1x32xf32>
    %cst_14 = arith.constant 0.000000e+00 : f32
    %13 = vector.broadcast %cst_14 : f32 to vector<1x32xf32>
    %14 = arith.maximumf %12, %13 : vector<1x32xf32>
    %c0_15 = arith.constant 0 : index
    %c0_16 = arith.constant 0 : index
    %15 = vector.load %arg4[%c0_15, %c0_16] : memref<32x16xf32, #tpu.memory_space<vmem>>, vector<32x16xf32>
    %cst_17 = arith.constant dense<0.000000e+00> : vector<1x16xf32>
    %16 = tpu.matmul %14, %15, %cst_17 {dimension_numbers = #tpu.dot_dimension_numbers<[1], [0], [0], [1], [0, 0, 1, 1], [], []>} : vector<1x32xf32>, vector<32x16xf32>, vector<1x16xf32> -> vector<1x16xf32>
    %c0_18 = arith.constant 0 : index
    %c0_19 = arith.constant 0 : index
    %17 = vector.load %arg5[%c0_18, %c0_19] : memref<1x16xf32, #tpu.memory_space<vmem>>, vector<1x16xf32>
    %18 = arith.addf %16, %17 : vector<1x16xf32>
    %19 = vector.extract_strided_slice %18 {offsets = [0, 0], sizes = [1, 8], strides = [1, 1]} : vector<1x16xf32> to vector<1x8xf32>
    %20 = vector.extract_strided_slice %18 {offsets = [0, 8], sizes = [1, 8], strides = [1, 1]} : vector<1x16xf32> to vector<1x8xf32>
    %21 = arith.maximumf %19, %20 : vector<1x8xf32>
    %22 = arith.subf %19, %21 : vector<1x8xf32>
    %23 = math.exp %22 : vector<1x8xf32>
    %24 = arith.subf %20, %21 : vector<1x8xf32>
    %25 = math.exp %24 : vector<1x8xf32>
    %26 = arith.addf %23, %25 : vector<1x8xf32>
    %27 = arith.divf %23, %26 : vector<1x8xf32>
    %28 = vector.extract_strided_slice %27 {offsets = [0, 0], sizes = [1, 4], strides = [1, 1]} : vector<1x8xf32> to vector<1x4xf32>
    %29 = vector.shape_cast %28 : vector<1x4xf32> to vector<1x1x4x1xf32>
    %c0_20 = arith.constant 0 : index
    %c0_21 = arith.constant 0 : index
    %c0_22 = arith.constant 0 : index
    %c0_23 = arith.constant 0 : index
    %30 = vector.load %arg1[%c0_20, %c0_21, %c0_22, %c0_23] : memref<1x2x4x256xf32, #tpu.memory_space<vmem>>, vector<1x1x4x256xf32>
    %31 = vector.broadcast %29 : vector<1x1x4x1xf32> to vector<1x1x4x256xf32>
    %32 = arith.mulf %31, %30 : vector<1x1x4x256xf32>
    %c0_24 = arith.constant 0 : index
    %c0_25 = arith.constant 0 : index
    %c0_26 = arith.constant 0 : index
    %c0_27 = arith.constant 0 : index
    %33 = vector.load %arg6[%c0_24, %c0_25, %c0_26, %c0_27] : memref<1x2x4x256xf32, #tpu.memory_space<vmem>>, vector<1x1x4x256xf32>
    tpu.vector_store %arg6[%c0_24, %c0_25, %c0_26, %c0_27], %32 {strides = array<i32>} : memref<1x2x4x256xf32, #tpu.memory_space<vmem>>, vector<1x1x4x256xf32>,
    %34 = vector.extract_strided_slice %27 {offsets = [0, 4], sizes = [1, 4], strides = [1, 1]} : vector<1x8xf32> to vector<1x4xf32>
    %35 = vector.shape_cast %34 : vector<1x4xf32> to vector<1x1x4x1xf32>
    %c0_28 = arith.constant 0 : index
    %c1_29 = arith.constant 1 : index
    %c0_30 = arith.constant 0 : index
    %c0_31 = arith.constant 0 : index
    %36 = vector.load %arg1[%c0_28, %c1_29, %c0_30, %c0_31] : memref<1x2x4x256xf32, #tpu.memory_space<vmem>>, vector<1x1x4x256xf32>
    %37 = vector.broadcast %35 : vector<1x1x4x1xf32> to vector<1x1x4x256xf32>
    %38 = arith.mulf %37, %36 : vector<1x1x4x256xf32>
    %c0_32 = arith.constant 0 : index
    %c1_33 = arith.constant 1 : index
    %c0_34 = arith.constant 0 : index
    %c0_35 = arith.constant 0 : index
    %39 = vector.load %arg6[%c0_32, %c1_33, %c0_34, %c0_35] : memref<1x2x4x256xf32, #tpu.memory_space<vmem>>, vector<1x1x4x256xf32>
    tpu.vector_store %arg6[%c0_32, %c1_33, %c0_34, %c0_35], %38 {strides = array<i32>} : memref<1x2x4x256xf32, #tpu.memory_space<vmem>>, vector<1x1x4x256xf32>,
    return
  }
  func.func @transform_0(%arg0: i32) -> (i32, i32, i32, i32) {
    %c0_i32 = arith.constant 0 : i32
    %c0_i32_0 = arith.constant 0 : i32
    %c0_i32_1 = arith.constant 0 : i32
    %c0_i32_2 = arith.constant 0 : i32
    return %arg0, %c0_i32, %c0_i32_0, %c0_i32_1 : i32, i32, i32, i32
  }
  func.func @transform_1(%arg0: i32) -> (i32, i32) {
    %c0_i32 = arith.constant 0 : i32
    %c0_i32_0 = arith.constant 0 : i32
    %c0_i32_1 = arith.constant 0 : i32
    return %c0_i32, %c0_i32_0 : i32, i32
  }
  func.func @transform_2(%arg0: i32) -> (i32, i32) {
    %c0_i32 = arith.constant 0 : i32
    %c0_i32_0 = arith.constant 0 : i32
    %c0_i32_1 = arith.constant 0 : i32
    return %c0_i32, %c0_i32_0 : i32, i32
  }
  func.func @transform_3(%arg0: i32) -> (i32, i32) {
    %c0_i32 = arith.constant 0 : i32
    %c0_i32_0 = arith.constant 0 : i32
    %c0_i32_1 = arith.constant 0 : i32
    return %c0_i32, %c0_i32_0 : i32, i32
  }
  func.func @transform_4(%arg0: i32) -> (i32, i32) {
    %c0_i32 = arith.constant 0 : i32
    %c0_i32_0 = arith.constant 0 : i32
    %c0_i32_1 = arith.constant 0 : i32
    return %c0_i32, %c0_i32_0 : i32, i32
  }
  func.func @transform_5(%arg0: i32) -> (i32, i32, i32, i32) {
    %c0_i32 = arith.constant 0 : i32
    %c0_i32_0 = arith.constant 0 : i32
    %c0_i32_1 = arith.constant 0 : i32
    %c0_i32_2 = arith.constant 0 : i32
    return %arg0, %c0_i32, %c0_i32_0, %c0_i32_1 : i32, i32, i32, i32
  }
}

</mosaic_0001>

<llo_original>
// kernel: tpu_custom_call.1
$region0: #{tpu_custom_call.1}
  #allocation0 [shape = 'u32[]', space=smem, size = 0x4, offset = 0x4, fixed_abs, tag = 'smem constant byte address 0x4 - core index']
  #allocation1 [shape = 'u32[144,128]{1,0:T(1,128)}', space=vmem, size = 0x12000, scoped, tag = 'internal scratch']
  %s0 = inlined_call_operand.vmem [shape: f32[2,2,4,256], index: 0, kind: input, shape index: {}]
  %s1 = inlined_call_operand.vmem [shape: f32[4,32], index: 1, kind: input, shape index: {}]
  %s2 = inlined_call_operand.vmem [shape: f32[1,32], index: 2, kind: input, shape index: {}]
  %s3 = inlined_call_operand.vmem [shape: f32[32,16], index: 3, kind: input, shape index: {}]
  %s4 = inlined_call_operand.vmem [shape: f32[1,16], index: 4, kind: input, shape index: {}]
  %s5 = inlined_call_operand.hbm [shape: f32[2,2,4,256], index: 5, kind: output, shape index: {}]
  %s6 = sld [smem:[#allocation0]]
  $region53: #{tpu_custom_call.1} parent=0
    _
  %s8 = ssub.s32 1, %s6
  %s9 = scalar_select 0, %s8, %s6
  $region1: #{tpu_custom_call.1} parent=0
    #allocation2 [shape = 'u8[16384]{0}', space=vmem, size = 0x4000, scoped, tag = 'output window, operand 0']
    #allocation3 [shape = 's32[2]{0}', space=sflag, size = 0x8, scoped, tag = 'scoped memory for tpu_custom_call.1']
    %10 = vsyncpa [#allocation3], 0
    %s11 = scalar_lea.sflag [#allocation3], 1
    %12 = vsyncpa %s11, 0
    loop: start=0, step=1, limit=4
    $region2: #{tpu_custom_call.1} parent=1 // loop_pre_header
      _
    $region3: #{tpu_custom_call.1} parent=1 // loop_header
      %s14 = sphi 0, %s18
      %p15 = scmp.ge.s32.totalorder %s14, 4
      %s24 = sphi 0, %s26
      %s27 = sphi 0, %s24
      %s28 = sphi 0, %s27
      %s44 = sphi 0, %s28
      %s48 = sphi 0, %s48
      %s50 = sphi 0, %s48
      %s51 = sphi 0, %s50
      %s65 = sphi 0, %s51
      %s69 = sphi 0, %s69
      %s71 = sphi 0, %s69
      %s72 = sphi 0, %s71
      %s86 = sphi 0, %s72
      %s90 = sphi 0, %s90
      %s92 = sphi 0, %s90
      %s93 = sphi 0, %s92
      %s107 = sphi 0, %s93
      %s111 = sphi 0, %s111
      %s113 = sphi 0, %s111
      %s114 = sphi 0, %s113
      %s128 = sphi 0, %s114
      %s134 = sphi 0, %s136
      %s137 = sphi 0, %s134
      %s138 = sphi 0, %s137
      %s154 = sphi 0, %s138
    $region4: #{tpu_custom_call.1} parent=1 // loop_header_branch
      %17 = sbr.rel (%p15) target = $region8
    $region5: #{tpu_custom_call.1} parent=1 // loop_body
      %s19 = ssub.s32 %s14, 1
      %s20 = ssub.s32 %s14, 2
      %s21 = sadd.s32 %s14, 1
      %s22 = ssub.s32 %s14, %s21
      %p23 = scmp.eq.s32.totalorder %s22, 0
      %s25 = sadd.s32 %s24, 1
      %s26 = scalar_select %p23, %s24, %s25
      %p29 = pneg %p23
      %p30 = scmp.eq.s32.totalorder %s14, 1
      %p31 = por %p29, %p30
      %p32 = scmp.ne.s32.totalorder %s24, %s27
      %p33 = scmp.eq.s32.totalorder %s14, 0
      %p34 = por %p32, %p33
      %p35 = scmp.ne.s32.totalorder %s24, %s27
      %p36 = scmp.eq.s32.totalorder %s19, 1
      %p37 = por %p35, %p36
      %p38 = scmp.ne.s32.totalorder %s27, %s28
      %p39 = scmp.eq.s32.totalorder %s19, 0
      %p40 = por %p38, %p39
      %p41 = scmp.ne.s32.totalorder %s27, %s28
      %p42 = scmp.eq.s32.totalorder %s20, 1
      %p43 = por %p41, %p42
      %p45 = scmp.ne.s32.totalorder %s28, %s44
      %p46 = scmp.eq.s32.totalorder %s20, 0
      %p47 = por %p45, %p46
      %s49 = sadd.s32 %s48, 1
      %p52 = scmp.eq.s32.totalorder %s14, 1
      %p53 = scmp.ne.s32.totalorder %s48, %s50
      %p54 = scmp.eq.s32.totalorder %s14, 0
      %p55 = por %p53, %p54
      %p56 = scmp.ne.s32.totalorder %s48, %s50
      %p57 = scmp.eq.s32.totalorder %s19, 1
      %p58 = por %p56, %p57
      %p59 = scmp.ne.s32.totalorder %s50, %s51
      %p60 = scmp.eq.s32.totalorder %s19, 0
      %p61 = por %p59, %p60
      %p62 = scmp.ne.s32.totalorder %s50, %s51
      %p63 = scmp.eq.s32.totalorder %s20, 1
      %p64 = por %p62, %p63
      %p66 = scmp.ne.s32.totalorder %s51, %s65
      %p67 = scmp.eq.s32.totalorder %s20, 0
      %p68 = por %p66, %p67
      %s70 = sadd.s32 %s69, 1
      %p73 = scmp.eq.s32.totalorder %s14, 1
      %p74 = scmp.ne.s32.totalorder %s69, %s71
      %p75 = scmp.eq.s32.totalorder %s14, 0
      %p76 = por %p74, %p75
      %p77 = scmp.ne.s32.totalorder %s69, %s71
      %p78 = scmp.eq.s32.totalorder %s19, 1
      %p79 = por %p77, %p78
      %p80 = scmp.ne.s32.totalorder %s71, %s72
      %p81 = scmp.eq.s32.totalorder %s19, 0
      %p82 = por %p80, %p81
      %p83 = scmp.ne.s32.totalorder %s71, %s72
      %p84 = scmp.eq.s32.totalorder %s20, 1
      %p85 = por %p83, %p84
      %p87 = scmp.ne.s32.totalorder %s72, %s86
      %p88 = scmp.eq.s32.totalorder %s20, 0
      %p89 = por %p87, %p88
      %s91 = sadd.s32 %s90, 1
      %p94 = scmp.eq.s32.totalorder %s14, 1
      %p95 = scmp.ne.s32.totalorder %s90, %s92
      %p96 = scmp.eq.s32.totalorder %s14, 0
      %p97 = por %p95, %p96
      %p98 = scmp.ne.s32.totalorder %s90, %s92
      %p99 = scmp.eq.s32.totalorder %s19, 1
      %p100 = por %p98, %p99
      %p101 = scmp.ne.s32.totalorder %s92, %s93
      %p102 = scmp.eq.s32.totalorder %s19, 0
      %p103 = por %p101, %p102
      %p104 = scmp.ne.s32.totalorder %s92, %s93
      %p105 = scmp.eq.s32.totalorder %s20, 1
      %p106 = por %p104, %p105
      %p108 = scmp.ne.s32.totalorder %s93, %s107
      %p109 = scmp.eq.s32.totalorder %s20, 0
      %p110 = por %p108, %p109
      %s112 = sadd.s32 %s111, 1
      %p115 = scmp.eq.s32.totalorder %s14, 1
      %p116 = scmp.ne.s32.totalorder %s111, %s113
      %p117 = scmp.eq.s32.totalorder %s14, 0
      %p118 = por %p116, %p117
      %p119 = scmp.ne.s32.totalorder %s111, %s113
      %p120 = scmp.eq.s32.totalorder %s19, 1
      %p121 = por %p119, %p120
      %p122 = scmp.ne.s32.totalorder %s113, %s114
      %p123 = scmp.eq.s32.totalorder %s19, 0
      %p124 = por %p122, %p123
      %p125 = scmp.ne.s32.totalorder %s113, %s114
      %p126 = scmp.eq.s32.totalorder %s20, 1
      %p127 = por %p125, %p126
      %p129 = scmp.ne.s32.totalorder %s114, %s128
      %p130 = scmp.eq.s32.totalorder %s20, 0
      %p131 = por %p129, %p130
      %s132 = ssub.s32 %s14, %s21
      %p133 = scmp.eq.s32.totalorder %s132, 0
      %s135 = sadd.s32 %s134, 1
      %s136 = scalar_select %p133, %s134, %s135
      %p139 = pneg %p133
      %p140 = scmp.eq.s32.totalorder %s14, 1
      %p141 = por %p139, %p140
      %p142 = scmp.ne.s32.totalorder %s134, %s137
      %p143 = scmp.eq.s32.totalorder %s14, 0
      %p144 = por %p142, %p143
      %p145 = scmp.ne.s32.totalorder %s134, %s137
      %p146 = scmp.eq.s32.totalorder %s19, 1
      %p147 = por %p145, %p146
      %p148 = scmp.ne.s32.totalorder %s137, %s138
      %p149 = scmp.eq.s32.totalorder %s19, 0
      %p150 = por %p148, %p149
      %p151 = scmp.ne.s32.totalorder %s137, %s138
      %p152 = scmp.eq.s32.totalorder %s20, 1
      %p153 = por %p151, %p152
      %p155 = scmp.ne.s32.totalorder %s138, %s154
      %p156 = scmp.eq.s32.totalorder %s20, 0
      %p157 = por %p155, %p156
      %p158 = scmp.le.s32.totalorder 1, %s14
      %p159 = scmp.lt.s32.totalorder %s14, 3
      %p160 = pnand %p158, %p159
      %p161 = pneg %p160
      // Predicated region
      $region9: #{tpu_custom_call.1} parent=5 // pred_check
        _
      $region10: #{tpu_custom_call.1} parent=5 // pred_check_branch
        %163 = sbr.rel (%p160) target = $region12
      $region11: #{tpu_custom_call.1} parent=5 // pred_region
        %s164 = ssub.s32 %s14, 1
        // Predicated region
        $region13: #{tpu_custom_call.1} parent=11 // pred_check
          %p165 = pneg %p61
        $region14: #{tpu_custom_call.1} parent=11 // pred_check_branch
          %167 = sbr.rel (%p165) target = $region16
        $region15: #{tpu_custom_call.1} parent=11 // pred_region
          _
        $region16: #{tpu_custom_call.1} parent=11 // pred_fallthru
          _
        // Predicated region
        $region17: #{tpu_custom_call.1} parent=11 // pred_check
          %p168 = pneg %p82
        $region18: #{tpu_custom_call.1} parent=11 // pred_check_branch
          %170 = sbr.rel (%p168) target = $region20
        $region19: #{tpu_custom_call.1} parent=11 // pred_region
          _
        $region20: #{tpu_custom_call.1} parent=11 // pred_fallthru
          _
        // Predicated region
        $region21: #{tpu_custom_call.1} parent=11 // pred_check
          %p171 = pneg %p103
        $region22: #{tpu_custom_call.1} parent=11 // pred_check_branch
          %173 = sbr.rel (%p171) target = $region24
        $region23: #{tpu_custom_call.1} parent=11 // pred_region
          _
        $region24: #{tpu_custom_call.1} parent=11 // pred_fallthru
          _
        // Predicated region
        $region25: #{tpu_custom_call.1} parent=11 // pred_check
          %p174 = pneg %p124
        $region26: #{tpu_custom_call.1} parent=11 // pred_check_branch
          %176 = sbr.rel (%p174) target = $region28
        $region27: #{tpu_custom_call.1} parent=11 // pred_region
          _
        $region28: #{tpu_custom_call.1} parent=11 // pred_fallthru
          _
      $region12: #{tpu_custom_call.1} parent=5 // pred_fallthru
        _
      %p177 = scmp.lt.s32.totalorder %s14, 2
      // Predicated region
      $region29: #{tpu_custom_call.1} parent=5 // pred_check
        %p178 = pneg %p177
      $region30: #{tpu_custom_call.1} parent=5 // pred_check_branch
        %180 = sbr.rel (%p178) target = $region32
      $region31: #{tpu_custom_call.1} parent=5 // pred_region
        // Predicated region
        $region33: #{tpu_custom_call.1} parent=31 // pred_check
          %p181 = pneg %p34
        $region34: #{tpu_custom_call.1} parent=31 // pred_check_branch
          %183 = sbr.rel (%p181) target = $region36
        $region35: #{tpu_custom_call.1} parent=31 // pred_region
          %p184 = scmp.lt.s32.totalorder %s14, 1
          %s185 = scalar_select %p184, %s14, 1
          %s186 = smul.addr %s185, 4
          %s187 = smul.addr %s186, 4
          %s188 = scalar_lea.vmem %s0, %s187
        $region36: #{tpu_custom_call.1} parent=31 // pred_fallthru
          _
      $region32: #{tpu_custom_call.1} parent=5 // pred_fallthru
        _
      %p189 = scmp.le.s32.totalorder 1, %s14
      %p190 = scmp.lt.s32.totalorder %s14, 3
      %p191 = pnand %p189, %p190
      %p192 = pneg %p191
      // Predicated region
      $region37: #{tpu_custom_call.1} parent=5 // pred_check
        _
      $region38: #{tpu_custom_call.1} parent=5 // pred_check_branch
        %194 = sbr.rel (%p191) target = $region40
      $region39: #{tpu_custom_call.1} parent=5 // pred_region
        %s195 = ssub.s32 %s14, 1
        %p196 = scmp.lt.s32.totalorder %s19, 1
        %s197 = scalar_select %p196, %s19, 1
        %s198 = smul.addr %s197, 4
        %s199 = smul.addr %s198, 4
        %s200 = scalar_lea.vmem %s0, %s199
        %p201 = pneg %p40
        %p202 = pneg %p37
        %p203 = pneg %p61
        %p204 = pneg %p58
        %p205 = pneg %p82
        %p206 = pneg %p79
        %p207 = pneg %p103
        %p208 = pneg %p100
        %p209 = pneg %p124
        %p210 = pneg %p121
        %p211 = pneg %p150
        %p212 = pneg %p147
        %s213 = sand.u32 %s137, 1
        %s214 = scalar_lea.sflag [#allocation3], %s213
        %s215 = sand.u32 %s137, 1
        %s216 = smul.addr %s215, 16
        %s217 = scalar_lea.vmem [#allocation2], %s216
        %p218 = scmp.lt.s32.totalorder %s19, 1
        %s219 = scalar_select %p218, %s19, 1
        %s220 = smul.addr %s219, 4
        %s221 = smul.addr %s220, 4
        %s222 = scalar_lea.vmem %s0, %s221
        %v223 = vld [vmem:[%s222] sm:$0xff]
        %v225 = vcombine.high %v223, %v223
        %vm227 = vcmask 1043456
        %v228 = vsel %vm227, %v223, 0.0
        %v229 = vsel %vm227, %v225, 0.0
        %v230 = vadd.f32 %v228, %v229
        %231 = vadd.xlane.f32.xlu0 %v230
        %v232 = vpop.xlane.xlu0 %231
        %v233 = vadd.f32 %v232, 0.0
        %s234 = scalar_lea.vmem %s222, 8
        %v235 = vld [vmem:[%s234] sm:$0xff]
        %v237 = vcombine.high %v235, %v235
        %v239 = vsel %vm227, %v235, 0.0
        %v240 = vsel %vm227, %v237, 0.0
        %v241 = vadd.f32 %v239, %v240
        %242 = vadd.xlane.f32.xlu0 %v241
        %v243 = vpop.xlane.xlu0 %242
        %v244 = vadd.f32 %v233, %v243
        %v245 = vmul.f32 %v244, 0.00390625
        %v246 = vld [vmem:[%s1] sm:$0xf]
        %v247 = vld [vmem:[%s2] sm:$0x1]
        %v249 = vlaneseq
        %v250 = vand.u32 %v249, 127
        %v251 = vlaneseq
        %v252 = vshrl.u32 %v251, 7
        %v253 = vsub.s32 %v250, %v252
        %v254 = vrot.slane %v245, %v253
        %vm255 = vcmask 31744
        %v256 = vsel %vm255, %v254, 0
        %v259 = vsel %vm227, %v246, 0
        %261 = vmatprep.subr.mxu0 0.0
        %262 = vmatpush1.msra.mxu0 %v259
        %263 = vmatprep.subr.mxu0 0.0
        %264 = vmatpush1.msra.mxu0 0.0
        %265 = vmatprep.subr.mxu0 0.0
        %266 = vmatpush1.msra.mxu0 0.0
        %267 = vmatprep.subr.mxu0 0.0
        %268 = vmatpush1.msra.mxu0 0.0
        %269 = vmatprep.subr.mxu0 0.0
        %270 = vmatpush1.msra.mxu0 0.0
        %271 = vmatprep.subr.mxu0 0.0
        %272 = vmatpush1.msra.mxu0 0.0
        %273 = vmatprep.subr.mxu0 0.0
        %274 = vmatpush1.msra.mxu0 0.0
        %275 = vmatprep.subr.mxu0 0.0
        %276 = vmatpush1.msra.mxu0 0.0
        %277 = vmatprep.subr.mxu0 0.0
        %278 = vmatpush1.msra.mxu0 0.0
        %279 = vmatprep.subr.mxu0 0.0
        %280 = vmatpush1.msra.mxu0 0.0
        %281 = vmatprep.subr.mxu0 0.0
        %282 = vmatpush1.msra.mxu0 0.0
        %283 = vmatprep.subr.mxu0 0.0
        %284 = vmatpush1.msra.mxu0 0.0
        %285 = vmatprep.subr.mxu0 0.0
        %286 = vmatpush1.msra.mxu0 0.0
        %287 = vmatprep.subr.mxu0 0.0
        %288 = vmatpush1.msra.mxu0 0.0
        %289 = vmatprep.subr.mxu0 0.0
        %290 = vmatpush1.msra.mxu0 0.0
        %291 = vmatprep.subr.mxu0 0.0
        %292 = vmatpush1.msra.mxu0 0.0
        %293 = vmatprep.subr.mxu0 0.0
        %294 = vmatpush1.msra.mxu0 0.0
        %295 = vmatprep.subr.mxu0 0.0
        %296 = vmatpush1.msra.mxu0 0.0
        %297 = vmatprep.subr.mxu0 0.0
        %298 = vmatpush1.msra.mxu0 0.0
        %299 = vmatprep.subr.mxu0 0.0
        %300 = vmatpush1.msra.mxu0 0.0
        %301 = vmatprep.subr.mxu0 0.0
        %302 = vmatpush1.msra.mxu0 0.0
        %303 = vmatprep.subr.mxu0 0.0
        %304 = vmatpush1.msra.mxu0 0.0
        %305 = vmatprep.subr.mxu0 0.0
        %306 = vmatpush1.msra.mxu0 0.0
        %307 = vmatprep.subr.mxu0 0.0
        %308 = vmatpush1.msra.mxu0 0.0
        %309 = vmatprep.subr.mxu0 0.0
        %310 = vmatpush1.msra.mxu0 0.0
        %311 = vmatprep.subr.mxu0 0.0
        %312 = vmatpush1.msra.mxu0 0.0
        %313 = vmatprep.subr.mxu0 0.0
        %314 = vmatpush1.msra.mxu0 0.0
        %315 = vmatprep.subr.mxu0 0.0
        %316 = vmatpush1.msra.mxu0 0.0
        %317 = vmatprep.subr.mxu0 0.0
        %318 = vmatpush1.msra.mxu0 0.0
        %319 = vmatprep.subr.mxu0 0.0
        %320 = vmatpush1.msra.mxu0 0.0
        %321 = vmatprep.subr.mxu0 0.0
        %322 = vmatpush1.msra.mxu0 0.0
        %323 = vmatprep.subr.mxu0 0.0
        %324 = vmatpush1.msra.mxu0 0.0
        %325 = vmatprep.mubr.f32.mxu0 0.0
        %326 = vmatmul.mubr.f32.gmra.mrb[0].mxu0 %v256
        %v327 = vpop.f32.mrb[0].mxu0
        %v328 = vadd.f32 %v247, %v327
        %v329 = vpop.f32.mrb[0].mxu0
        %330 = vdwg.mxu0
        %v331 = vmax.f32 %v328, 0.0
        %v332 = vld [vmem:[%s3] sm:$0xff]
        %v333 = vld [vmem:[%s3 + $0x8] sm:$0xff]
        %v334 = vld [vmem:[%s3 + $0x10] sm:$0xff]
        %v335 = vld [vmem:[%s3 + $0x18] sm:$0xff]
        %v336 = vld [vmem:[%s4] sm:$0x1]
        %vm337 = vcmask 261120
        %v339 = vsel %vm337, %v331, 0
        %341 = vmatprep.subr.mxu0 0.0
        %342 = vmatpush1.msra.mxu0 %v332
        %343 = vmatprep.subr.mxu0 0.0
        %344 = vmatpush1.msra.mxu0 %v333
        %345 = vmatprep.subr.mxu0 0.0
        %346 = vmatpush1.msra.mxu0 %v334
        %347 = vmatprep.subr.mxu0 0.0
        %348 = vmatpush1.msra.mxu0 %v335
        %349 = vmatprep.subr.mxu0 0.0
        %350 = vmatpush1.msra.mxu0 0.0
        %351 = vmatprep.subr.mxu0 0.0
        %352 = vmatpush1.msra.mxu0 0.0
        %353 = vmatprep.subr.mxu0 0.0
        %354 = vmatpush1.msra.mxu0 0.0
        %355 = vmatprep.subr.mxu0 0.0
        %356 = vmatpush1.msra.mxu0 0.0
        %357 = vmatprep.subr.mxu0 0.0
        %358 = vmatpush1.msra.mxu0 0.0
        %359 = vmatprep.subr.mxu0 0.0
        %360 = vmatpush1.msra.mxu0 0.0
        %361 = vmatprep.subr.mxu0 0.0
        %362 = vmatpush1.msra.mxu0 0.0
        %363 = vmatprep.subr.mxu0 0.0
        %364 = vmatpush1.msra.mxu0 0.0
        %365 = vmatprep.subr.mxu0 0.0
        %366 = vmatpush1.msra.mxu0 0.0
        %367 = vmatprep.subr.mxu0 0.0
        %368 = vmatpush1.msra.mxu0 0.0
        %369 = vmatprep.subr.mxu0 0.0
        %370 = vmatpush1.msra.mxu0 0.0
        %371 = vmatprep.subr.mxu0 0.0
        %372 = vmatpush1.msra.mxu0 0.0
        %373 = vmatprep.subr.mxu0 0.0
        %374 = vmatpush1.msra.mxu0 0.0
        %375 = vmatprep.subr.mxu0 0.0
        %376 = vmatpush1.msra.mxu0 0.0
        %377 = vmatprep.subr.mxu0 0.0
        %378 = vmatpush1.msra.mxu0 0.0
        %379 = vmatprep.subr.mxu0 0.0
        %380 = vmatpush1.msra.mxu0 0.0
        %381 = vmatprep.subr.mxu0 0.0
        %382 = vmatpush1.msra.mxu0 0.0
        %383 = vmatprep.subr.mxu0 0.0
        %384 = vmatpush1.msra.mxu0 0.0
        %385 = vmatprep.subr.mxu0 0.0
        %386 = vmatpush1.msra.mxu0 0.0
        %387 = vmatprep.subr.mxu0 0.0
        %388 = vmatpush1.msra.mxu0 0.0
        %389 = vmatprep.subr.mxu0 0.0
        %390 = vmatpush1.msra.mxu0 0.0
        %391 = vmatprep.subr.mxu0 0.0
        %392 = vmatpush1.msra.mxu0 0.0
        %393 = vmatprep.subr.mxu0 0.0
        %394 = vmatpush1.msra.mxu0 0.0
        %395 = vmatprep.subr.mxu0 0.0
        %396 = vmatpush1.msra.mxu0 0.0
        %397 = vmatprep.subr.mxu0 0.0
        %398 = vmatpush1.msra.mxu0 0.0
        %399 = vmatprep.subr.mxu0 0.0
        %400 = vmatpush1.msra.mxu0 0.0
        %401 = vmatprep.subr.mxu0 0.0
        %402 = vmatpush1.msra.mxu0 0.0
        %403 = vmatprep.subr.mxu0 0.0
        %404 = vmatpush1.msra.mxu0 0.0
        %405 = vmatprep.mubr.f32.mxu0 0.0
        %406 = vmatmul.mubr.f32.gmra.mrb[0].mxu0 %v339
        %v407 = vpop.f32.mrb[0].mxu0
        %v408 = vadd.f32 %v336, %v407
        %v409 = vpop.f32.mrb[0].mxu0
        %410 = vdwg.mxu0
        %412 = vrot.lane.b32.xlu0 %v408, 120
        %v413 = vpop.permute.xlu0 %412
        %v415 = vmax.f32 %v408, %v413
        %v416 = vsub.f32 %v408, %v415
        %v417 = vmul.f32 %v416, 1.442695
        %v418 = vpow.pop %v417
        %420 = vrot.lane.b32.xlu0 %v415, 8
        %v421 = vpop.permute.xlu0 %420
        %v423 = vsub.f32 %v408, %v421
        %v424 = vmul.f32 %v423, 1.442695
        %v425 = vpow.pop %v424
        %427 = vrot.lane.b32.xlu0 %v425, 120
        %v428 = vpop.permute.xlu0 %427
        %v430 = vadd.f32 %v418, %v428
        %v431 = vrcp.pop %v430
        %v432 = vmul.f32 %v418, %v431
        %v433 = vlaneseq
        %v434 = vshrl.u32 %v433, 7
        %v435 = vsub.s32 0, %v434
        %v436 = vrot.slane %v432, %v435
        %438 = vbcast.lane.b32.xlu0 %v436, 256
        %v439 = vpop.permute.xlu0 %438
        %v440 = vmul.f32 %v439, %v223
        %v441 = vmul.f32 %v439, %v225
        %v444 = vcombine.low %v440, %v441
        %446 = vst [vmem:[%s217] sm:$0xff] %v444
        %s448 = sor.u32 256, 4
        %449 = vbcast.lane.b32.xlu0 %v436, %s448
        %v450 = vpop.permute.xlu0 %449
        %v451 = vld [vmem:[%s234] sm:$0xff]
        %v453 = vcombine.high %v451, %v451
        %v455 = vmul.f32 %v450, %v451
        %v456 = vmul.f32 %v450, %v453
        %v459 = vcombine.low %v455, %v456
        %s461 = scalar_lea.vmem %s217, 8 [#allocation2]
        %462 = vst [vmem:[%s461] sm:$0xff] %v459
        %s463 = sand.u32 %s137, 1
        %s464 = scalar_lea.sflag [#allocation3], %s463
        %s465 = sand.u32 %s137, 1
        %s466 = smul.addr %s465, 16
        %s467 = scalar_lea.vmem [#allocation2], %s466
        // Predicated region
        $region41: #{tpu_custom_call.1} parent=39 // pred_check
          %p468 = pneg %p147
        $region42: #{tpu_custom_call.1} parent=39 // pred_check_branch
          %470 = sbr.rel (%p468) target = $region44
        $region43: #{tpu_custom_call.1} parent=39 // pred_region
          %s472 = ssub.s32 256, 256
          %473 = vsyncadd %s464, %s472
          %s474 = smul.addr %s19, 4
          %s475 = smul.addr %s474, 64
          %s476 = scalar_lea.hbm %s5, %s475
          %s477 = sshll.u32 %s467, 4
          %s478 = int_to_ptr.vmem [resolvable:$true] %s477
          %483 = dma.vmem_to_hbm [thread:$0]  %s478, 256, %s476, %s464, 128, 128, 8
        $region44: #{tpu_custom_call.1} parent=39 // pred_fallthru
          _
      $region40: #{tpu_custom_call.1} parent=5 // pred_fallthru
        _
      %p484 = scmp.le.s32.totalorder 2, %s14
      // Predicated region
      $region45: #{tpu_custom_call.1} parent=5 // pred_check
        %p485 = pneg %p484
      $region46: #{tpu_custom_call.1} parent=5 // pred_check_branch
        %487 = sbr.rel (%p485) target = $region48
      $region47: #{tpu_custom_call.1} parent=5 // pred_region
        %s488 = ssub.s32 %s14, 2
        // Predicated region
        $region49: #{tpu_custom_call.1} parent=47 // pred_check
          %p489 = pneg %p153
        $region50: #{tpu_custom_call.1} parent=47 // pred_check_branch
          %491 = sbr.rel (%p489) target = $region52
        $region51: #{tpu_custom_call.1} parent=47 // pred_region
          %s492 = sand.u32 %s138, 1
          %s493 = scalar_lea.sflag [#allocation3], %s492
          %s494 = sand.u32 %s138, 1
          %s495 = smul.addr %s494, 16
          %s496 = scalar_lea.vmem [#allocation2], %s495
          %497 = dma.done %s493, 256
        $region52: #{tpu_custom_call.1} parent=47 // pred_fallthru
          _
      $region48: #{tpu_custom_call.1} parent=5 // pred_fallthru
        _
    $region6: #{tpu_custom_call.1} parent=1 // loop_footer
      %s18 = sadd.s32 1, %s14
    $region7: #{tpu_custom_call.1} parent=1 // loop_footer_branch
      %13 = sbr.rel target = $region3
    $region8: #{tpu_custom_call.1} parent=1 // loop_exit
      _
    %498 = vsyncpa [#allocation3], 1
    %s499 = scalar_lea.sflag [#allocation3], 1
    %500 = vsyncpa %s499, 1

</llo_original>
